<compile_context>
chip_gen: v7x
topology: tpu7x:2x2x1
jax: 0.10.0
libtpu: 0.0.40
codegen_flags: <defaults>
</compile_context>

<pallas_src>
import jax
import jax.numpy as jnp
from jax.experimental import pallas as pl
from jax.experimental.pallas import tpu as pltpu

INPUT_SIZE = 28 * 28   # 784
HIDDEN1 = 100
HIDDEN2 = 50
OUTPUT_SIZE = 10
BN_EPS = 1e-5

# Lane-padded feature sizes (multiples of 128).
H1_PAD = 128
H2_PAD = 128
OUT_PAD = 128

TILE_MAX = 1024        # batch-tile rows; fits v5e's 16 MiB scoped VMEM default
STAT_ROWS = 8          # per-tile stats slab: row0=mean, row1=M2, rest zero pad


def _round_up(x, m):
    return ((x + m - 1) // m) * m


def _pad2(a, rows, cols, dtype):
    r, c = a.shape
    return jnp.pad(a, ((0, rows - r), (0, cols - c))).astype(dtype)


def pack_params(params):
    """Zero-pad feature dims to lane multiples; cast MXU operands to bf16."""
    bf, f32 = jnp.bfloat16, jnp.float32
    return dict(
        w1=_pad2(params["w1"], INPUT_SIZE, H1_PAD, bf),   # K stays 784
        g1=_pad2(params["g1"], 1, H1_PAD, f32),
        be1=_pad2(params["be1"], 1, H1_PAD, f32),
        w2=_pad2(params["w2"], H1_PAD, H2_PAD, bf),
        g2=_pad2(params["g2"], 1, H2_PAD, f32),
        be2=_pad2(params["be2"], 1, H2_PAD, f32),
        w3=_pad2(params["w3"], H2_PAD, OUT_PAD, bf),
        b3=_pad2(params["b3"], 1, OUT_PAD, f32),
    )


def _fold_bn(stats, counts, gamma, beta):
    """Chan-merge per-tile (mean, M2) and fold BN affine into scale/shift.

    stats:  [n_tiles*STAT_ROWS, F] f32 (row0=tile mean, row1=tile M2)
    counts: [n_tiles] f32 valid rows per tile
    Returns [2, F]: row0 = scale, row1 = shift.  Tiny arrays -> plain XLA.
    """
    s = stats.reshape(-1, STAT_ROWS, stats.shape[-1])
    means, m2s = s[:, 0, :], s[:, 1, :]
    n = counts[:, None]
    total = jnp.sum(n)
    mean = jnp.sum(n * means, axis=0, keepdims=True) / total
    m2 = (jnp.sum(m2s, axis=0, keepdims=True)
          + jnp.sum(n * (means - mean) ** 2, axis=0, keepdims=True))
    var = m2 / total                                   # biased (training-mode BN)
    scale = gamma * jax.lax.rsqrt(var + BN_EPS)
    shift = beta - mean * scale
    return jnp.concatenate([scale, shift], axis=0)     # (2, F)


def net_forward(x, packed):
    """x: [N, 784] float32 (unpadded); packed: output of pack_params()."""
    n = x.shape[0]
    tile = min(TILE_MAX, _round_up(n, 8))
    n_tiles = (n + tile - 1) // tile
    n_rows = n_tiles * tile            # padded row count of intermediates/output
    parallel = pltpu.CompilerParams(dimension_semantics=("parallel",))

    def row_mask():
        # Valid-row mask for the (possibly ragged) last batch tile.
        i = pl.program_id(0)
        valid = jnp.minimum(tile, n - i * tile)
        rows = jax.lax.broadcasted_iota(jnp.int32, (tile, 1), 0)
        return rows < valid, valid

    def tile_stats(h, mask, valid):
        # Centered per-tile statistics (mean, M2) -> robust Chan merge later.
        inv = 1.0 / valid.astype(jnp.float32)
        mean = jnp.sum(h, axis=0, keepdims=True) * inv
        centered = jnp.where(mask, h - mean, 0.0)
        m2 = jnp.sum(centered * centered, axis=0, keepdims=True)
        pad = jnp.zeros((STAT_ROWS - 2, h.shape[1]), jnp.float32)
        return jnp.concatenate([mean, m2, pad], axis=0)          # (STAT_ROWS, F)

    # ---------- phase A: fc1 (bias cancels in BN) + per-tile h1 stats --------
    def fc1_kernel(x_ref, w1_ref, h1_ref, st_ref):
        mask, valid = row_mask()
        xb = x_ref[...].astype(jnp.bfloat16)      # cast in-kernel; no wrapper pad
        h = jnp.dot(xb, w1_ref[...], preferred_element_type=jnp.float32)
        h = jnp.where(mask, h, 0.0)               # zero ragged/garbage rows
        h1_ref[...] = h.astype(jnp.bfloat16)
        st_ref[...] = tile_stats(h, mask, valid)

    h1, st1 = pl.pallas_call(
        fc1_kernel,
        grid=(n_tiles,),
        in_specs=[pl.BlockSpec((tile, INPUT_SIZE), lambda i: (i, 0)),
                  pl.BlockSpec((INPUT_SIZE, H1_PAD), lambda i: (0, 0))],
        out_specs=(pl.BlockSpec((tile, H1_PAD), lambda i: (i, 0)),
                   pl.BlockSpec((STAT_ROWS, H1_PAD), lambda i: (i, 0))),
        out_shape=(jax.ShapeDtypeStruct((n_rows, H1_PAD), jnp.bfloat16),
                   jax.ShapeDtypeStruct((n_tiles * STAT_ROWS, H1_PAD),
                                        jnp.float32)),
        compiler_params=parallel,
        cost_estimate=pl.CostEstimate(
            flops=2 * n_rows * INPUT_SIZE * H1_PAD, transcendentals=0,
            bytes_accessed=int(n * INPUT_SIZE * 4 + INPUT_SIZE * H1_PAD * 2
                               + n_rows * H1_PAD * 2)),
    )(x, packed["w1"])

    counts = jnp.asarray([min(tile, n - t * tile) for t in range(n_tiles)],
                         jnp.float32)
    ss1 = _fold_bn(st1, counts, packed["g1"], packed["be1"])       # (2, H1_PAD)

    # ---------- phase B: bn1 + relu -> fc2 + per-tile h2 stats ---------------
    def bn1_fc2_kernel(h1_ref, ss_ref, w2_ref, h2_ref, st_ref):
        mask, valid = row_mask()
        ss = ss_ref[...]
        a1 = jnp.maximum(h1_ref[...].astype(jnp.float32) * ss[0:1, :]
                         + ss[1:2, :], 0.0)
        h = jnp.dot(a1.astype(jnp.bfloat16), w2_ref[...],
                    preferred_element_type=jnp.float32)
        h = jnp.where(mask, h, 0.0)
        h2_ref[...] = h.astype(jnp.bfloat16)
        st_ref[...] = tile_stats(h, mask, valid)

    h2, st2 = pl.pallas_call(
        bn1_fc2_kernel,
        grid=(n_tiles,),
        in_specs=[pl.BlockSpec((tile, H1_PAD), lambda i: (i, 0)),
                  pl.BlockSpec((2, H1_PAD), lambda i: (0, 0)),
                  pl.BlockSpec((H1_PAD, H2_PAD), lambda i: (0, 0))],
        out_specs=(pl.BlockSpec((tile, H2_PAD), lambda i: (i, 0)),
                   pl.BlockSpec((STAT_ROWS, H2_PAD), lambda i: (i, 0))),
        out_shape=(jax.ShapeDtypeStruct((n_rows, H2_PAD), jnp.bfloat16),
                   jax.ShapeDtypeStruct((n_tiles * STAT_ROWS, H2_PAD),
                                        jnp.float32)),
        compiler_params=parallel,
        cost_estimate=pl.CostEstimate(
            flops=2 * n_rows * H1_PAD * H2_PAD, transcendentals=0,
            bytes_accessed=int(n_rows * H1_PAD * 2 + H1_PAD * H2_PAD * 2
                               + n_rows * H2_PAD * 2)),
    )(h1, ss1, packed["w2"])

    ss2 = _fold_bn(st2, counts, packed["g2"], packed["be2"])       # (2, H2_PAD)

    # ---------- phase C: bn2 + relu -> fc3 (+bias) ---------------------------
    def bn2_fc3_kernel(h2_ref, ss_ref, w3_ref, b3_ref, o_ref):
        ss = ss_ref[...]
        a2 = jnp.maximum(h2_ref[...].astype(jnp.float32) * ss[0:1, :]
                         + ss[1:2, :], 0.0)
        out = jnp.dot(a2.astype(jnp.bfloat16), w3_ref[...],
                      preferred_element_type=jnp.float32)
        o_ref[...] = out + b3_ref[...]          # padded b3 lanes are zero

    out_pad = pl.pallas_call(
        bn2_fc3_kernel,
        grid=(n_tiles,),
        in_specs=[pl.BlockSpec((tile, H2_PAD), lambda i: (i, 0)),
                  pl.BlockSpec((2, H2_PAD), lambda i: (0, 0)),
                  pl.BlockSpec((H2_PAD, OUT_PAD), lambda i: (0, 0)),
                  pl.BlockSpec((1, OUT_PAD), lambda i: (0, 0))],
        out_specs=pl.BlockSpec((tile, OUT_PAD), lambda i: (i, 0)),
        out_shape=jax.ShapeDtypeStruct((n_rows, OUT_PAD), jnp.float32),
        compiler_params=parallel,
        cost_estimate=pl.CostEstimate(
            flops=2 * n_rows * H2_PAD * OUT_PAD, transcendentals=0,
            bytes_accessed=int(n_rows * H2_PAD * 2 + H2_PAD * OUT_PAD * 2
                               + n_rows * OUT_PAD * 4)),
    )(h2, ss2, packed["w3"], packed["b3"])

    # NOTE: this slice is one extra XLA pass over the (small) output; consumers
    # that can take the lane-padded [n_rows, 128] slab should use out_pad.
    return out_pad[:n, :OUTPUT_SIZE]


def init_params(key):
    """Deterministic parameter init (PyTorch-Linear-style uniform fan-in)."""
    ks = jax.random.split(key, 6)

    def linear(kw, kb, fan_in, fan_out):
        bound = 1.0 / jnp.sqrt(float(fan_in))
        w = jax.random.uniform(kw, (fan_in, fan_out), jnp.float32, -bound, bound)
        b = jax.random.uniform(kb, (1, fan_out), jnp.float32, -bound, bound)
        return w, b

    w1, b1 = linear(ks[0], ks[1], INPUT_SIZE, HIDDEN1)
    w2, b2 = linear(ks[2], ks[3], HIDDEN1, HIDDEN2)
    w3, b3 = linear(ks[4], ks[5], HIDDEN2, OUTPUT_SIZE)

    return dict(
        w1=w1, b1=b1,
        g1=jnp.ones((1, HIDDEN1), jnp.float32),
        be1=jnp.zeros((1, HIDDEN1), jnp.float32),
        w2=w2, b2=b2,
        g2=jnp.ones((1, HIDDEN2), jnp.float32),
        be2=jnp.zeros((1, HIDDEN2), jnp.float32),
        w3=w3, b3=b3,
    )


def _reference_f32(x, p):
    """Exact f32 PyTorch training-mode forward (fc biases included)."""
    def bn_relu(h, g, b):
        m = jnp.mean(h, axis=0, keepdims=True)
        v = jnp.mean((h - m) ** 2, axis=0, keepdims=True)
        return jnp.maximum((h - m) / jnp.sqrt(v + BN_EPS) * g + b, 0.0)
    h = bn_relu(x @ p["w1"] + p["b1"], p["g1"], p["be1"])
    h = bn_relu(h @ p["w2"] + p["b2"], p["g2"], p["be2"])
    return h @ p["w3"] + p["b3"]


def _reference_kernel_math(x, p):
    """Mirrors the kernel's math (bf16 MXU inputs, bf16-stored h1/h2,
    folded scale/shift from f32 batch stats, dropped pre-BN biases)."""
    bf, f32 = jnp.bfloat16, jnp.float32

    def stats(h):
        m = jnp.mean(h, axis=0, keepdims=True)
        v = jnp.mean((h - m) ** 2, axis=0, keepdims=True)
        return m, v

    def fold(g, b, m, v):
        s = g * jax.lax.rsqrt(v + BN_EPS)
        return s, b - m * s

    h1 = jnp.dot(x.astype(bf), p["w1"].astype(bf), preferred_element_type=f32)
    s1, t1 = fold(p["g1"], p["be1"], *stats(h1))
    a1 = jnp.maximum(h1.astype(bf).astype(f32) * s1 + t1, 0.0)
    h2 = jnp.dot(a1.astype(bf), p["w2"].astype(bf), preferred_element_type=f32)
    s2, t2 = fold(p["g2"], p["be2"], *stats(h2))
    a2 = jnp.maximum(h2.astype(bf).astype(f32) * s2 + t2, 0.0)
    return (jnp.dot(a2.astype(bf), p["w3"].astype(bf),
                    preferred_element_type=f32) + p["b3"])


if __name__ == "__main__":
    key = jax.random.PRNGKey(0)
    k_x, k_p = jax.random.split(key)

    params = init_params(k_p)
    packed = pack_params(params)
    fwd = jax.jit(net_forward)

    # batch=8 exercises the aligned path; batch=12 exercises the ragged
    # last-tile masking path (batch tile rounds up to 16 rows).
    for batch in (8, 12):
        x = jax.random.normal(jax.random.fold_in(k_x, batch),
                              (batch, INPUT_SIZE), jnp.float32)
        out = jax.block_until_ready(fwd(x, packed))
        assert out.shape == (batch, OUTPUT_SIZE)

        # Tight check against a reference mirroring the kernel's math.
        ref_k = _reference_kernel_math(x, params)
        assert jnp.allclose(out, ref_k, atol=2e-2, rtol=2e-2), float(
            jnp.max(jnp.abs(out - ref_k)))

        # Loose check against exact-f32 PyTorch semantics (fc1/fc2 biases
        # included — they cancel inside BatchNorm); only bf16 rounding differs.
        ref_f = _reference_f32(x, params)
        assert jnp.allclose(out, ref_f, atol=8e-2, rtol=8e-2), float(
            jnp.max(jnp.abs(out - ref_f)))

    print("KERNEL_OK")
</pallas_src>

<mosaic_0001>
module attributes {stable_mosaic.version = 11 : i64} {
  func.func @fc1_kernel(%arg0: i32, %arg1: memref<8x784xf32, #tpu.memory_space<vmem>>, %arg2: memref<784x128xbf16, #tpu.memory_space<vmem>>, %arg3: memref<8x128xbf16, #tpu.memory_space<vmem>>, %arg4: memref<8x128xf32, #tpu.memory_space<vmem>>) attributes {dimension_semantics = [#tpu.dimension_semantics<parallel>], iteration_bounds = array<i64: 1>, scalar_prefetch = 0 : i64, scratch_operands = 0 : i64, tpu.core_type = #tpu.core_type<tc>, window_params = [{transform_indices = @transform_0, window_bounds = array<i64: 8, 784>}, {pipeline_mode = #tpu.pipeline_mode<synchronous>, transform_indices = @transform_1, window_bounds = array<i64: 784, 128>}, {transform_indices = @transform_2, window_bounds = array<i64: 8, 128>}, {transform_indices = @transform_3, window_bounds = array<i64: 8, 128>}]} {
    %c8_i32 = arith.constant 8 : i32
    %0 = arith.muli %arg0, %c8_i32 : i32
    %c8_i32_0 = arith.constant 8 : i32
    %1 = arith.subi %c8_i32_0, %0 : i32
    %c8_i32_1 = arith.constant 8 : i32
    %2 = arith.minsi %c8_i32_1, %1 : i32
    %3 = tpu.iota {dimensions = array<i32: 0>} : vector<8x1xi32>
    %4 = vector.broadcast %2 : i32 to vector<8x1xi32>
    %5 = arith.cmpi slt, %3, %4 : vector<8x1xi32>
    %c0 = arith.constant 0 : index
    %c0_2 = arith.constant 0 : index
    %6 = vector.load %arg1[%c0, %c0_2] : memref<8x784xf32, #tpu.memory_space<vmem>>, vector<8x784xf32>
    %7 = arith.truncf %6 : vector<8x784xf32> to vector<8x784xbf16>
    %c0_3 = arith.constant 0 : index
    %c0_4 = arith.constant 0 : index
    %8 = vector.load %arg2[%c0_3, %c0_4] : memref<784x128xbf16, #tpu.memory_space<vmem>>, vector<784x128xbf16>
    %cst = arith.constant dense<0.000000e+00> : vector<8x128xf32>
    %9 = tpu.matmul %7, %8, %cst {dimension_numbers = #tpu.dot_dimension_numbers<[1], [0], [0], [1], [0, 0, 1, 1], [], []>} : vector<8x784xbf16>, vector<784x128xbf16>, vector<8x128xf32> -> vector<8x128xf32>
    %cst_5 = arith.constant 0.000000e+00 : f32
    %10 = vector.shape_cast %5 : vector<8x1xi1> to vector<8x1xi1>
    %11 = vector.broadcast %10 : vector<8x1xi1> to vector<8x128xi1>
    %12 = vector.broadcast %cst_5 : f32 to vector<8x128xf32>
    %13 = arith.select %11, %9, %12 : vector<8x128xi1>, vector<8x128xf32>
    %14 = arith.truncf %13 : vector<8x128xf32> to vector<8x128xbf16>
    %c0_6 = arith.constant 0 : index
    %c0_7 = arith.constant 0 : index
    %15 = vector.load %arg3[%c0_6, %c0_7] : memref<8x128xbf16, #tpu.memory_space<vmem>>, vector<8x128xbf16>
    tpu.vector_store %arg3[%c0_6, %c0_7], %14 {strides = array<i32>} : memref<8x128xbf16, #tpu.memory_space<vmem>>, vector<8x128xbf16>,
    %16 = arith.sitofp %2 : i32 to f32
    %cst_8 = arith.constant 1.000000e+00 : f32
    %17 = arith.divf %cst_8, %16 : f32
    %cst_9 = arith.constant dense<0.000000e+00> : vector<128xf32>
    %18 = vector.multi_reduction <add>, %13, %cst_9 [0] : vector<8x128xf32> to vector<128xf32>
    %19 = vector.shape_cast %18 : vector<128xf32> to vector<1x128xf32>
    %20 = vector.broadcast %17 : f32 to vector<1x128xf32>
    %21 = arith.mulf %19, %20 : vector<1x128xf32>
    %22 = vector.broadcast %21 : vector<1x128xf32> to vector<8x128xf32>
    %23 = arith.subf %13, %22 : vector<8x128xf32>
    %cst_10 = arith.constant 0.000000e+00 : f32
    %24 = vector.shape_cast %5 : vector<8x1xi1> to vector<8x1xi1>
    %25 = vector.broadcast %24 : vector<8x1xi1> to vector<8x128xi1>
    %26 = vector.broadcast %cst_10 : f32 to vector<8x128xf32>
    %27 = arith.select %25, %23, %26 : vector<8x128xi1>, vector<8x128xf32>
    %28 = arith.mulf %27, %27 : vector<8x128xf32>
    %cst_11 = arith.constant dense<0.000000e+00> : vector<128xf32>
    %29 = vector.multi_reduction <add>, %28, %cst_11 [0] : vector<8x128xf32> to vector<128xf32>
    %30 = vector.shape_cast %29 : vector<128xf32> to vector<1x128xf32>
    %cst_12 = arith.constant 0.000000e+00 : f32
    %31 = vector.broadcast %cst_12 : f32 to vector<6x128xf32>
    %32 = tpu.concatenate %21, %30, %31 in 0 : vector<1x128xf32>, vector<1x128xf32>, vector<6x128xf32> -> vector<8x128xf32>
    %c0_13 = arith.constant 0 : index
    %c0_14 = arith.constant 0 : index
    %33 = vector.load %arg4[%c0_13, %c0_14] : memref<8x128xf32, #tpu.memory_space<vmem>>, vector<8x128xf32>
    tpu.vector_store %arg4[%c0_13, %c0_14], %32 {strides = array<i32>} : memref<8x128xf32, #tpu.memory_space<vmem>>, vector<8x128xf32>,
    return
  }
  func.func @transform_0(%arg0: i32) -> (i32, i32) {
    %c0_i32 = arith.constant 0 : i32
    %c0_i32_0 = arith.constant 0 : i32
    return %arg0, %c0_i32 : i32, i32
  }
  func.func @transform_1(%arg0: i32) -> (i32, i32) {
    %c0_i32 = arith.constant 0 : i32
    %c0_i32_0 = arith.constant 0 : i32
    %c0_i32_1 = arith.constant 0 : i32
    return %c0_i32, %c0_i32_0 : i32, i32
  }
  func.func @transform_2(%arg0: i32) -> (i32, i32) {
    %c0_i32 = arith.constant 0 : i32
    %c0_i32_0 = arith.constant 0 : i32
    return %arg0, %c0_i32 : i32, i32
  }
  func.func @transform_3(%arg0: i32) -> (i32, i32) {
    %c0_i32 = arith.constant 0 : i32
    %c0_i32_0 = arith.constant 0 : i32
    return %arg0, %c0_i32 : i32, i32
  }
}

module attributes {stable_mosaic.version = 11 : i64} {
  func.func @bn1_fc2_kernel(%arg0: i32, %arg1: memref<8x128xbf16, #tpu.memory_space<vmem>>, %arg2: memref<2x128xf32, #tpu.memory_space<vmem>>, %arg3: memref<128x128xbf16, #tpu.memory_space<vmem>>, %arg4: memref<8x128xbf16, #tpu.memory_space<vmem>>, %arg5: memref<8x128xf32, #tpu.memory_space<vmem>>) attributes {dimension_semantics = [#tpu.dimension_semantics<parallel>], iteration_bounds = array<i64: 1>, scalar_prefetch = 0 : i64, scratch_operands = 0 : i64, tpu.core_type = #tpu.core_type<tc>, window_params = [{transform_indices = @transform_0, window_bounds = array<i64: 8, 128>}, {pipeline_mode = #tpu.pipeline_mode<synchronous>, transform_indices = @transform_1, window_bounds = array<i64: 2, 128>}, {pipeline_mode = #tpu.pipeline_mode<synchronous>, transform_indices = @transform_2, window_bounds = array<i64: 128, 128>}, {transform_indices = @transform_3, window_bounds = array<i64: 8, 128>}, {transform_indices = @transform_4, window_bounds = array<i64: 8, 128>}]} {
    %c8_i32 = arith.constant 8 : i32
    %0 = arith.muli %arg0, %c8_i32 : i32
    %c8_i32_0 = arith.constant 8 : i32
    %1 = arith.subi %c8_i32_0, %0 : i32
    %c8_i32_1 = arith.constant 8 : i32
    %2 = arith.minsi %c8_i32_1, %1 : i32
    %3 = tpu.iota {dimensions = array<i32: 0>} : vector<8x1xi32>
    %4 = vector.broadcast %2 : i32 to vector<8x1xi32>
    %5 = arith.cmpi slt, %3, %4 : vector<8x1xi32>
    %c0 = arith.constant 0 : index
    %c0_2 = arith.constant 0 : index
    %6 = vector.load %arg2[%c0, %c0_2] : memref<2x128xf32, #tpu.memory_space<vmem>>, vector<2x128xf32>
    %c0_3 = arith.constant 0 : index
    %c0_4 = arith.constant 0 : index
    %7 = vector.load %arg1[%c0_3, %c0_4] : memref<8x128xbf16, #tpu.memory_space<vmem>>, vector<8x128xbf16>
    %8 = arith.extf %7 : vector<8x128xbf16> to vector<8x128xf32>
    %9 = vector.extract_strided_slice %6 {offsets = [0, 0], sizes = [1, 128], strides = [1, 1]} : vector<2x128xf32> to vector<1x128xf32>
    %10 = vector.broadcast %9 : vector<1x128xf32> to vector<8x128xf32>
    %11 = arith.mulf %8, %10 : vector<8x128xf32>
    %12 = vector.extract_strided_slice %6 {offsets = [1, 0], sizes = [1, 128], strides = [1, 1]} : vector<2x128xf32> to vector<1x128xf32>
    %13 = vector.broadcast %12 : vector<1x128xf32> to vector<8x128xf32>
    %14 = arith.addf %11, %13 : vector<8x128xf32>
    %cst = arith.constant 0.000000e+00 : f32
    %15 = vector.broadcast %cst : f32 to vector<8x128xf32>
    %16 = arith.maximumf %14, %15 : vector<8x128xf32>
    %17 = arith.truncf %16 : vector<8x128xf32> to vector<8x128xbf16>
    %c0_5 = arith.constant 0 : index
    %c0_6 = arith.constant 0 : index
    %18 = vector.load %arg3[%c0_5, %c0_6] : memref<128x128xbf16, #tpu.memory_space<vmem>>, vector<128x128xbf16>
    %cst_7 = arith.constant dense<0.000000e+00> : vector<8x128xf32>
    %19 = tpu.matmul %17, %18, %cst_7 {dimension_numbers = #tpu.dot_dimension_numbers<[1], [0], [0], [1], [0, 0, 1, 1], [], []>} : vector<8x128xbf16>, vector<128x128xbf16>, vector<8x128xf32> -> vector<8x128xf32>
    %cst_8 = arith.constant 0.000000e+00 : f32
    %20 = vector.shape_cast %5 : vector<8x1xi1> to vector<8x1xi1>
    %21 = vector.broadcast %20 : vector<8x1xi1> to vector<8x128xi1>
    %22 = vector.broadcast %cst_8 : f32 to vector<8x128xf32>
    %23 = arith.select %21, %19, %22 : vector<8x128xi1>, vector<8x128xf32>
    %24 = arith.truncf %23 : vector<8x128xf32> to vector<8x128xbf16>
    %c0_9 = arith.constant 0 : index
    %c0_10 = arith.constant 0 : index
    %25 = vector.load %arg4[%c0_9, %c0_10] : memref<8x128xbf16, #tpu.memory_space<vmem>>, vector<8x128xbf16>
    tpu.vector_store %arg4[%c0_9, %c0_10], %24 {strides = array<i32>} : memref<8x128xbf16, #tpu.memory_space<vmem>>, vector<8x128xbf16>,
    %26 = arith.sitofp %2 : i32 to f32
    %cst_11 = arith.constant 1.000000e+00 : f32
    %27 = arith.divf %cst_11, %26 : f32
    %cst_12 = arith.constant dense<0.000000e+00> : vector<128xf32>
    %28 = vector.multi_reduction <add>, %23, %cst_12 [0] : vector<8x128xf32> to vector<128xf32>
    %29 = vector.shape_cast %28 : vector<128xf32> to vector<1x128xf32>
    %30 = vector.broadcast %27 : f32 to vector<1x128xf32>
    %31 = arith.mulf %29, %30 : vector<1x128xf32>
    %32 = vector.broadcast %31 : vector<1x128xf32> to vector<8x128xf32>
    %33 = arith.subf %23, %32 : vector<8x128xf32>
    %cst_13 = arith.constant 0.000000e+00 : f32
    %34 = vector.shape_cast %5 : vector<8x1xi1> to vector<8x1xi1>
    %35 = vector.broadcast %34 : vector<8x1xi1> to vector<8x128xi1>
    %36 = vector.broadcast %cst_13 : f32 to vector<8x128xf32>
    %37 = arith.select %35, %33, %36 : vector<8x128xi1>, vector<8x128xf32>
    %38 = arith.mulf %37, %37 : vector<8x128xf32>
    %cst_14 = arith.constant dense<0.000000e+00> : vector<128xf32>
    %39 = vector.multi_reduction <add>, %38, %cst_14 [0] : vector<8x128xf32> to vector<128xf32>
    %40 = vector.shape_cast %39 : vector<128xf32> to vector<1x128xf32>
    %cst_15 = arith.constant 0.000000e+00 : f32
    %41 = vector.broadcast %cst_15 : f32 to vector<6x128xf32>
    %42 = tpu.concatenate %31, %40, %41 in 0 : vector<1x128xf32>, vector<1x128xf32>, vector<6x128xf32> -> vector<8x128xf32>
    %c0_16 = arith.constant 0 : index
    %c0_17 = arith.constant 0 : index
    %43 = vector.load %arg5[%c0_16, %c0_17] : memref<8x128xf32, #tpu.memory_space<vmem>>, vector<8x128xf32>
    tpu.vector_store %arg5[%c0_16, %c0_17], %42 {strides = array<i32>} : memref<8x128xf32, #tpu.memory_space<vmem>>, vector<8x128xf32>,
    return
  }
  func.func @transform_0(%arg0: i32) -> (i32, i32) {
    %c0_i32 = arith.constant 0 : i32
    %c0_i32_0 = arith.constant 0 : i32
    return %arg0, %c0_i32 : i32, i32
  }
  func.func @transform_1(%arg0: i32) -> (i32, i32) {
    %c0_i32 = arith.constant 0 : i32
    %c0_i32_0 = arith.constant 0 : i32
    %c0_i32_1 = arith.constant 0 : i32
    return %c0_i32, %c0_i32_0 : i32, i32
  }
  func.func @transform_2(%arg0: i32) -> (i32, i32) {
    %c0_i32 = arith.constant 0 : i32
    %c0_i32_0 = arith.constant 0 : i32
    %c0_i32_1 = arith.constant 0 : i32
    return %c0_i32, %c0_i32_0 : i32, i32
  }
  func.func @transform_3(%arg0: i32) -> (i32, i32) {
    %c0_i32 = arith.constant 0 : i32
    %c0_i32_0 = arith.constant 0 : i32
    return %arg0, %c0_i32 : i32, i32
  }
  func.func @transform_4(%arg0: i32) -> (i32, i32) {
    %c0_i32 = arith.constant 0 : i32
    %c0_i32_0 = arith.constant 0 : i32
    return %arg0, %c0_i32 : i32, i32
  }
}

module attributes {stable_mosaic.version = 11 : i64} {
  func.func @bn2_fc3_kernel(%arg0: i32, %arg1: memref<8x128xbf16, #tpu.memory_space<vmem>>, %arg2: memref<2x128xf32, #tpu.memory_space<vmem>>, %arg3: memref<128x128xbf16, #tpu.memory_space<vmem>>, %arg4: memref<1x128xf32, #tpu.memory_space<vmem>>, %arg5: memref<8x128xf32, #tpu.memory_space<vmem>>) attributes {dimension_semantics = [#tpu.dimension_semantics<parallel>], iteration_bounds = array<i64: 1>, scalar_prefetch = 0 : i64, scratch_operands = 0 : i64, tpu.core_type = #tpu.core_type<tc>, window_params = [{transform_indices = @transform_0, window_bounds = array<i64: 8, 128>}, {pipeline_mode = #tpu.pipeline_mode<synchronous>, transform_indices = @transform_1, window_bounds = array<i64: 2, 128>}, {pipeline_mode = #tpu.pipeline_mode<synchronous>, transform_indices = @transform_2, window_bounds = array<i64: 128, 128>}, {pipeline_mode = #tpu.pipeline_mode<synchronous>, transform_indices = @transform_3, window_bounds = array<i64: 1, 128>}, {transform_indices = @transform_4, window_bounds = array<i64: 8, 128>}]} {
    %c0 = arith.constant 0 : index
    %c0_0 = arith.constant 0 : index
    %0 = vector.load %arg2[%c0, %c0_0] : memref<2x128xf32, #tpu.memory_space<vmem>>, vector<2x128xf32>
    %c0_1 = arith.constant 0 : index
    %c0_2 = arith.constant 0 : index
    %1 = vector.load %arg1[%c0_1, %c0_2] : memref<8x128xbf16, #tpu.memory_space<vmem>>, vector<8x128xbf16>
    %2 = arith.extf %1 : vector<8x128xbf16> to vector<8x128xf32>
    %3 = vector.extract_strided_slice %0 {offsets = [0, 0], sizes = [1, 128], strides = [1, 1]} : vector<2x128xf32> to vector<1x128xf32>
    %4 = vector.broadcast %3 : vector<1x128xf32> to vector<8x128xf32>
    %5 = arith.mulf %2, %4 : vector<8x128xf32>
    %6 = vector.extract_strided_slice %0 {offsets = [1, 0], sizes = [1, 128], strides = [1, 1]} : vector<2x128xf32> to vector<1x128xf32>
    %7 = vector.broadcast %6 : vector<1x128xf32> to vector<8x128xf32>
    %8 = arith.addf %5, %7 : vector<8x128xf32>
    %cst = arith.constant 0.000000e+00 : f32
    %9 = vector.broadcast %cst : f32 to vector<8x128xf32>
    %10 = arith.maximumf %8, %9 : vector<8x128xf32>
    %11 = arith.truncf %10 : vector<8x128xf32> to vector<8x128xbf16>
    %c0_3 = arith.constant 0 : index
    %c0_4 = arith.constant 0 : index
    %12 = vector.load %arg3[%c0_3, %c0_4] : memref<128x128xbf16, #tpu.memory_space<vmem>>, vector<128x128xbf16>
    %cst_5 = arith.constant dense<0.000000e+00> : vector<8x128xf32>
    %13 = tpu.matmul %11, %12, %cst_5 {dimension_numbers = #tpu.dot_dimension_numbers<[1], [0], [0], [1], [0, 0, 1, 1], [], []>} : vector<8x128xbf16>, vector<128x128xbf16>, vector<8x128xf32> -> vector<8x128xf32>
    %c0_6 = arith.constant 0 : index
    %c0_7 = arith.constant 0 : index
    %14 = vector.load %arg4[%c0_6, %c0_7] : memref<1x128xf32, #tpu.memory_space<vmem>>, vector<1x128xf32>
    %15 = vector.broadcast %14 : vector<1x128xf32> to vector<8x128xf32>
    %16 = arith.addf %13, %15 : vector<8x128xf32>
    %c0_8 = arith.constant 0 : index
    %c0_9 = arith.constant 0 : index
    %17 = vector.load %arg5[%c0_8, %c0_9] : memref<8x128xf32, #tpu.memory_space<vmem>>, vector<8x128xf32>
    tpu.vector_store %arg5[%c0_8, %c0_9], %16 {strides = array<i32>} : memref<8x128xf32, #tpu.memory_space<vmem>>, vector<8x128xf32>,
    return
  }
  func.func @transform_0(%arg0: i32) -> (i32, i32) {
    %c0_i32 = arith.constant 0 : i32
    %c0_i32_0 = arith.constant 0 : i32
    return %arg0, %c0_i32 : i32, i32
  }
  func.func @transform_1(%arg0: i32) -> (i32, i32) {
    %c0_i32 = arith.constant 0 : i32
    %c0_i32_0 = arith.constant 0 : i32
    %c0_i32_1 = arith.constant 0 : i32
    return %c0_i32, %c0_i32_0 : i32, i32
  }
  func.func @transform_2(%arg0: i32) -> (i32, i32) {
    %c0_i32 = arith.constant 0 : i32
    %c0_i32_0 = arith.constant 0 : i32
    %c0_i32_1 = arith.constant 0 : i32
    return %c0_i32, %c0_i32_0 : i32, i32
  }
  func.func @transform_3(%arg0: i32) -> (i32, i32) {
    %c0_i32 = arith.constant 0 : i32
    %c0_i32_0 = arith.constant 0 : i32
    %c0_i32_1 = arith.constant 0 : i32
    return %c0_i32, %c0_i32_0 : i32, i32
  }
  func.func @transform_4(%arg0: i32) -> (i32, i32) {
    %c0_i32 = arith.constant 0 : i32
    %c0_i32_0 = arith.constant 0 : i32
    return %arg0, %c0_i32 : i32, i32
  }
}

</mosaic_0001>

<llo_original>
// kernel: net_forward.4
$region0: #{net_forward.4}
  #allocation0 [shape = 'u32[]', space=smem, size = 0x4, offset = 0x4, fixed_abs, tag = 'smem constant byte address 0x4 - core index']
  #allocation1 [shape = 'u32[144,128]{1,0:T(1,128)}', space=vmem, size = 0x12000, scoped, tag = 'internal scratch']
  %s0 = inlined_call_operand.vmem [shape: bf16[8,128], index: 0, kind: input, shape index: {}]
  %s1 = inlined_call_operand.vmem [shape: f32[2,128], index: 1, kind: input, shape index: {}]
  %s2 = inlined_call_operand.vmem [shape: bf16[128,128], index: 2, kind: input, shape index: {}]
  %s3 = inlined_call_operand.vmem [shape: bf16[8,128], index: 3, kind: output, shape index: {0}]
  %s4 = inlined_call_operand.vmem [shape: f32[8,128], index: 4, kind: output, shape index: {1}]
  %5 = xla_tuple %s3, %s4
  %s6 = sld [smem:[#allocation0]]
  $region30: #{net_forward.4} parent=0
    _
  %s8 = ssub.s32 1, %s6
  %s9 = scalar_select 0, %s8, %s6
  // Predicated region
  $region2: #{net_forward.4} parent=0 // pred_check
    _
  $region3: #{net_forward.4} parent=0 // pred_check_branch
    %11 = sbr.rel (0) target = $region5
  $region4: #{net_forward.4} parent=0 // pred_region
    _
  $region5: #{net_forward.4} parent=0 // pred_fallthru
    _
  // Predicated region
  $region6: #{net_forward.4} parent=0 // pred_check
    _
  $region7: #{net_forward.4} parent=0 // pred_check_branch
    %13 = sbr.rel (0) target = $region9
  $region8: #{net_forward.4} parent=0 // pred_region
    _
  $region9: #{net_forward.4} parent=0 // pred_fallthru
    _
  // Predicated region
  $region10: #{net_forward.4} parent=0 // pred_check
    _
  $region11: #{net_forward.4} parent=0 // pred_check_branch
    %15 = sbr.rel (0) target = $region13
  $region12: #{net_forward.4} parent=0 // pred_region
    _
  $region13: #{net_forward.4} parent=0 // pred_fallthru
    _
  %s17 = smul.u32 0, 8
  %s18 = ssub.s32 8, %s17
  %p19 = scmp.lt.s32.totalorder %s18, 8
  %s20 = scalar_select %p19, %s18, 8
  %v21 = vlaneseq
  %v22 = vshrl.u32 %v21, 7
  %v23 = vstv %s20
  %vm24 = vcmp.lt.s32.totalorder %v22, %v23
  %v25 = vld [vmem:[%s1] sm:$0x3]
  %v26 = vld [vmem:[%s0] sm:$0xf]
  %v27 = vunpack.c.l.bf16 %v26
  %v28 = vlaneseq
  %v29 = vshrl.u32 %v28, 7
  %v30 = vsub.s32 0, %v29
  %v31 = vrot.slane %v25, %v30
  %v32 = vmul.f32 %v27, %v31
  %v33 = vlaneseq
  %v34 = vshrl.u32 %v33, 7
  %v35 = vsub.s32 1, %v34
  %v36 = vrot.slane %v25, %v35
  %v37 = vadd.f32 %v32, %v36
  %v38 = vmax.f32 %v37, 0.0
  %v39 = vpack.c.bf16 %v38, %v38
  %v40 = vld [vmem:[%s2] sm:$0xf]
  %v41 = vld [vmem:[%s2 + $0x4] sm:$0xf]
  %v42 = vld [vmem:[%s2 + $0x8] sm:$0xf]
  %v43 = vld [vmem:[%s2 + $0xc] sm:$0xf]
  %v44 = vld [vmem:[%s2 + $0x10] sm:$0xf]
  %v45 = vld [vmem:[%s2 + $0x14] sm:$0xf]
  %v46 = vld [vmem:[%s2 + $0x18] sm:$0xf]
  %v47 = vld [vmem:[%s2 + $0x1c] sm:$0xf]
  %v48 = vld [vmem:[%s2 + $0x20] sm:$0xf]
  %v49 = vld [vmem:[%s2 + $0x24] sm:$0xf]
  %v50 = vld [vmem:[%s2 + $0x28] sm:$0xf]
  %v51 = vld [vmem:[%s2 + $0x2c] sm:$0xf]
  %v52 = vld [vmem:[%s2 + $0x30] sm:$0xf]
  %v53 = vld [vmem:[%s2 + $0x34] sm:$0xf]
  %v54 = vld [vmem:[%s2 + $0x38] sm:$0xf]
  %v55 = vld [vmem:[%s2 + $0x3c] sm:$0xf]
  %v72 = vunpack.c.l.b16 %v40
  %v73 = vunpack.c.l.b16 %v41
  %v74 = vunpack.c.l.b16 %v42
  %v75 = vunpack.c.l.b16 %v43
  %v76 = vunpack.c.l.b16 %v44
  %v77 = vunpack.c.l.b16 %v45
  %v78 = vunpack.c.l.b16 %v46
  %v79 = vunpack.c.l.b16 %v47
  %v80 = vunpack.c.l.b16 %v48
  %v81 = vunpack.c.l.b16 %v49
  %v82 = vunpack.c.l.b16 %v50
  %v83 = vunpack.c.l.b16 %v51
  %v84 = vunpack.c.l.b16 %v52
  %v85 = vunpack.c.l.b16 %v53
  %v86 = vunpack.c.l.b16 %v54
  %v87 = vunpack.c.l.b16 %v55
  %v88 = vpack.c.b16 %v73, %v72
  %v89 = vpack.c.b16 %v75, %v74
  %v90 = vpack.c.b16 %v77, %v76
  %v91 = vpack.c.b16 %v79, %v78
  %v92 = vpack.c.b16 %v81, %v80
  %v93 = vpack.c.b16 %v83, %v82
  %v94 = vpack.c.b16 %v85, %v84
  %v95 = vpack.c.b16 %v87, %v86
  %104 = vmatprep.subr.bf16.mxu0 0
  %105 = vmatpush1.bf16.msra.mxu0 %v88
  %106 = vmatprep.subr.bf16.mxu0 0
  %107 = vmatpush1.bf16.msra.mxu0 %v89
  %108 = vmatprep.subr.bf16.mxu0 0
  %109 = vmatpush1.bf16.msra.mxu0 %v90
  %110 = vmatprep.subr.bf16.mxu0 0
  %111 = vmatpush1.bf16.msra.mxu0 %v91
  %112 = vmatprep.subr.bf16.mxu0 0
  %113 = vmatpush1.bf16.msra.mxu0 %v92
  %114 = vmatprep.subr.bf16.mxu0 0
  %115 = vmatpush1.bf16.msra.mxu0 %v93
  %116 = vmatprep.subr.bf16.mxu0 0
  %117 = vmatpush1.bf16.msra.mxu0 %v94
  %118 = vmatprep.subr.bf16.mxu0 0
  %119 = vmatpush1.bf16.msra.mxu0 %v95
  %120 = vmatprep.subr.bf16.mxu0 0
  %121 = vmatpush1.bf16.msra.mxu0 0
  %122 = vmatprep.subr.bf16.mxu0 0
  %123 = vmatpush1.bf16.msra.mxu0 0
  %124 = vmatprep.subr.bf16.mxu0 0
  %125 = vmatpush1.bf16.msra.mxu0 0
  %126 = vmatprep.subr.bf16.mxu0 0
  %127 = vmatpush1.bf16.msra.mxu0 0
  %128 = vmatprep.subr.bf16.mxu0 0
  %129 = vmatpush1.bf16.msra.mxu0 0
  %130 = vmatprep.subr.bf16.mxu0 0
  %131 = vmatpush1.bf16.msra.mxu0 0
  %132 = vmatprep.subr.bf16.mxu0 0
  %133 = vmatpush1.bf16.msra.mxu0 0
  %134 = vmatprep.subr.bf16.mxu0 0
  %135 = vmatpush1.bf16.msra.mxu0 0
  %136 = vmatprep.mubr.bf16.mxu0 0
  %137 = vmatmul.mubr.bf16.gmra.mrb[0].mxu0 %v39
  %v138 = vpop.f32.mrb[0].mxu0
  %v139 = vadd.f32 0.0, %v138
  %v140 = vpop.f32.mrb[0].mxu0
  %v141 = vpop.f32.mrb[0].mxu0
  %v142 = vpop.f32.mrb[0].mxu0
  %143 = vdwg.mxu0
  %v144 = vsel %vm24, 1, 0
  %vm145 = vcmp.eq.s32.totalorder %v144, 1
  %v146 = vsel %vm145, %v139, 0.0
  %v147 = vpack.c.bf16 %v146, %v146
  %148 = vst [vmem:[%s3] sm:$0xf] %v147
  %s149 = scvt.s32.f32 %s20
  %v150 = vstv %s149
  %v151 = vrcp.pop %v150
  %s152 = vtos %v151
  %v153 = vrot.slane %v146, 4
  %v154 = vadd.f32 %v146, %v153
  %v155 = vrot.slane %v154, 2
  %v156 = vadd.f32 %v154, %v155
  %v157 = vrot.slane %v156, 1
  %v158 = vadd.f32 %v156, %v157
  %v159 = vstv %s152
  %v160 = vmul.f32 %v158, %v159
  %v161 = vsub.f32 %v146, %v160
  %v162 = vsel %vm145, %v161, 0.0
  %v163 = vmul.f32 %v162, %v162
  %v164 = vrot.slane %v163, 4
  %v165 = vadd.f32 %v163, %v164
  %v166 = vrot.slane %v165, 2
  %v167 = vadd.f32 %v165, %v166
  %v168 = vrot.slane %v167, 1
  %v169 = vadd.f32 %v167, %v168
  %vm170 = vcmask 1040384
  %v171 = vsel %vm170, %v160, %v169
  %vm172 = vcmask 1041408
  %v173 = vsel %vm172, %v171, 0.0
  %174 = vst [vmem:[%s4] sm:$0xff] %v173
  // Predicated region
  $region14: #{net_forward.4} parent=0 // pred_check
    _
  $region15: #{net_forward.4} parent=0 // pred_check_branch
    %176 = sbr.rel (0) target = $region17
  $region16: #{net_forward.4} parent=0 // pred_region
    _
  $region17: #{net_forward.4} parent=0 // pred_fallthru
    _
  // Predicated region
  $region18: #{net_forward.4} parent=0 // pred_check
    _
  $region19: #{net_forward.4} parent=0 // pred_check_branch
    %178 = sbr.rel (0) target = $region21
  $region20: #{net_forward.4} parent=0 // pred_region
    _
  $region21: #{net_forward.4} parent=0 // pred_fallthru
    _
  // Predicated region
  $region22: #{net_forward.4} parent=0 // pred_check
    _
  $region23: #{net_forward.4} parent=0 // pred_check_branch
    %180 = sbr.rel (0) target = $region25
  $region24: #{net_forward.4} parent=0 // pred_region
    _
  $region25: #{net_forward.4} parent=0 // pred_fallthru
    _
  // Predicated region
  $region26: #{net_forward.4} parent=0 // pred_check
    _
  $region27: #{net_forward.4} parent=0 // pred_check_branch
    %182 = sbr.rel (0) target = $region29
  $region28: #{net_forward.4} parent=0 // pred_region
    _
  $region29: #{net_forward.4} parent=0 // pred_fallthru
    _

// kernel: net_forward.3
$region0: #{net_forward.3}
  #allocation0 [shape = 'u32[]', space=smem, size = 0x4, offset = 0x4, fixed_abs, tag = 'smem constant byte address 0x4 - core index']
  #allocation1 [shape = 'u32[144,128]{1,0:T(1,128)}', space=vmem, size = 0x12000, scoped, tag = 'internal scratch']
  %s0 = inlined_call_operand.hbm [shape: f32[8,784], index: 0, kind: input, shape index: {}]
  %s1 = inlined_call_operand.hbm [shape: bf16[784,128], index: 1, kind: input, shape index: {}]
  %s2 = inlined_call_operand.vmem [shape: bf16[8,128], index: 2, kind: output, shape index: {0}]
  %s3 = inlined_call_operand.vmem [shape: f32[8,128], index: 3, kind: output, shape index: {1}]
  %4 = xla_tuple %s2, %s3
  %s5 = sld [smem:[#allocation0]]
  $region34: #{net_forward.3} parent=0
    _
  %s7 = ssub.s32 1, %s5
  %s8 = scalar_select 0, %s7, %s5
  $region1: #{net_forward.3} parent=0
    #allocation2 [shape = 'u8[28672]{0}', space=vmem, size = 0x7000, scoped, tag = 'input window, operand 0, single buffered']
    #allocation3 [shape = 's32[1]{0}', space=sflag, size = 0x4, scoped, tag = 'scoped memory for net_forward.3']
    #allocation4 [shape = 'u8[200704]{0}', space=vmem, size = 0x31000, scoped, tag = 'input window, operand 1, single buffered']
    #allocation5 [shape = 's32[1]{0}', space=sflag, size = 0x4, scoped, tag = 'scoped memory for net_forward.3']
    %9 = vsyncpa [#allocation3], 0
    %10 = vsyncpa [#allocation5], 0
    // Predicated region
    $region2: #{net_forward.3} parent=1 // pred_check
      _
    $region3: #{net_forward.3} parent=1 // pred_check_branch
      %12 = sbr.rel (0) target = $region5
    $region4: #{net_forward.3} parent=1 // pred_region
      %s14 = ssub.s32 896, 896
      %15 = vsyncadd [#allocation3], %s14
      %s17 = sshll.u32 [#allocation2], 4
      %s18 = int_to_ptr.vmem [resolvable:$true] %s17
      %20 = dma.hbm_to_vmem [thread:$0]  %s0, 896, %s18, [#allocation3]
    $region5: #{net_forward.3} parent=1 // pred_fallthru
      _
    // Predicated region
    $region6: #{net_forward.3} parent=1 // pred_check
      _
    $region7: #{net_forward.3} parent=1 // pred_check_branch
      %22 = sbr.rel (0) target = $region9
    $region8: #{net_forward.3} parent=1 // pred_region
      %s24 = ssub.s32 6272, 6272
      %25 = vsyncadd [#allocation5], %s24
      %s26 = sshll.u32 [#allocation4], 4
      %s27 = int_to_ptr.vmem [resolvable:$true] %s26
      %32 = dma.hbm_to_vmem [thread:$0]  %s1, 6272, %s27, [#allocation5], 64, 64, 4
    $region9: #{net_forward.3} parent=1 // pred_fallthru
      _
    // Predicated region
    $region10: #{net_forward.3} parent=1 // pred_check
      _
    $region11: #{net_forward.3} parent=1 // pred_check_branch
      %34 = sbr.rel (0) target = $region13
    $region12: #{net_forward.3} parent=1 // pred_region
      %35 = dma.done [#allocation3], 896
    $region13: #{net_forward.3} parent=1 // pred_fallthru
      _
    // Predicated region
    $region14: #{net_forward.3} parent=1 // pred_check
      _
    $region15: #{net_forward.3} parent=1 // pred_check_branch
      %37 = sbr.rel (0) target = $region17
    $region16: #{net_forward.3} parent=1 // pred_region
      %38 = dma.done [#allocation5], 6272
    $region17: #{net_forward.3} parent=1 // pred_fallthru
      _
    %s40 = smul.u32 0, 8
    %s41 = ssub.s32 8, %s40
    %p42 = scmp.lt.s32.totalorder %s41, 8
    %s43 = scalar_select %p42, %s41, 8
    %v44 = vlaneseq
    %v45 = vshrl.u32 %v44, 7
    %v46 = vstv %s43
    %vm47 = vcmp.lt.s32.totalorder %v45, %v46
    %v48 = vld [vmem:[#allocation2] sm:$0xff]
    %v49 = vld [vmem:[#allocation2 + $0x8] sm:$0xff]
    %v50 = vld [vmem:[#allocation2 + $0x10] sm:$0xff]
    %v51 = vld [vmem:[#allocation2 + $0x18] sm:$0xff]
    %v52 = vld [vmem:[#allocation2 + $0x20] sm:$0xff]
    %v53 = vld [vmem:[#allocation2 + $0x28] sm:$0xff]
    %v54 = vld [vmem:[#allocation2 + $0x30] sm:$0xff]
    %v55 = vpack.c.bf16 %v48, %v48
    %v56 = vpack.c.bf16 %v49, %v49
    %v57 = vpack.c.bf16 %v50, %v50
    %v58 = vpack.c.bf16 %v51, %v51
    %v59 = vpack.c.bf16 %v52, %v52
    %v60 = vpack.c.bf16 %v53, %v53
    %v61 = vpack.c.bf16 %v54, %v54
    %v62 = vld [vmem:[#allocation4] sm:$0xf]
    %v63 = vld [vmem:[#allocation4 + $0x4] sm:$0xf]
    %v64 = vld [vmem:[#allocation4 + $0x8] sm:$0xf]
    %v65 = vld [vmem:[#allocation4 + $0xc] sm:$0xf]
    %v66 = vld [vmem:[#allocation4 + $0x10] sm:$0xf]
    %v67 = vld [vmem:[#allocation4 + $0x14] sm:$0xf]
    %v68 = vld [vmem:[#allocation4 + $0x18] sm:$0xf]
    %v69 = vld [vmem:[#allocation4 + $0x1c] sm:$0xf]
    %v70 = vld [vmem:[#allocation4 + $0x20] sm:$0xf]
    %v71 = vld [vmem:[#allocation4 + $0x24] sm:$0xf]
    %v72 = vld [vmem:[#allocation4 + $0x28] sm:$0xf]
    %v73 = vld [vmem:[#allocation4 + $0x2c] sm:$0xf]
    %v74 = vld [vmem:[#allocation4 + $0x30] sm:$0xf]
    %v75 = vld [vmem:[#allocation4 + $0x34] sm:$0xf]
    %v76 = vld [vmem:[#allocation4 + $0x38] sm:$0xf]
    %v77 = vld [vmem:[#allocation4 + $0x3c] sm:$0xf]
    %v78 = vld [vmem:[#allocation4 + $0x40] sm:$0xf]
    %v79 = vld [vmem:[#allocation4 + $0x44] sm:$0xf]
    %v80 = vld [vmem:[#allocation4 + $0x48] sm:$0xf]
    %v81 = vld [vmem:[#allocation4 + $0x4c] sm:$0xf]
    %v82 = vld [vmem:[#allocation4 + $0x50] sm:$0xf]
    %v83 = vld [vmem:[#allocation4 + $0x54] sm:$0xf]
    %v84 = vld [vmem:[#allocation4 + $0x58] sm:$0xf]
    %v85 = vld [vmem:[#allocation4 + $0x5c] sm:$0xf]
    %v86 = vld [vmem:[#allocation4 + $0x60] sm:$0xf]
    %v87 = vld [vmem:[#allocation4 + $0x64] sm:$0xf]
    %v88 = vld [vmem:[#allocation4 + $0x68] sm:$0xf]
    %v89 = vld [vmem:[#allocation4 + $0x6c] sm:$0xf]
    %v90 = vld [vmem:[#allocation4 + $0x70] sm:$0xf]
    %v91 = vld [vmem:[#allocation4 + $0x74] sm:$0xf]
    %v92 = vld [vmem:[#allocation4 + $0x78] sm:$0xf]
    %v93 = vld [vmem:[#allocation4 + $0x7c] sm:$0xf]
    %v94 = vld [vmem:[#allocation4 + $0x80] sm:$0xf]
    %v95 = vld [vmem:[#allocation4 + $0x84] sm:$0xf]
    %v96 = vld [vmem:[#allocation4 + $0x88] sm:$0xf]
    %v97 = vld [vmem:[#allocation4 + $0x8c] sm:$0xf]
    %v98 = vld [vmem:[#allocation4 + $0x90] sm:$0xf]
    %v99 = vld [vmem:[#allocation4 + $0x94] sm:$0xf]
    %v100 = vld [vmem:[#allocation4 + $0x98] sm:$0xf]
    %v101 = vld [vmem:[#allocation4 + $0x9c] sm:$0xf]
    %v102 = vld [vmem:[#allocation4 + $0xa0] sm:$0xf]
    %v103 = vld [vmem:[#allocation4 + $0xa4] sm:$0xf]
    %v104 = vld [vmem:[#allocation4 + $0xa8] sm:$0xf]
    %v105 = vld [vmem:[#allocation4 + $0xac] sm:$0xf]
    %v106 = vld [vmem:[#allocation4 + $0xb0] sm:$0xf]
    %v107 = vld [vmem:[#allocation4 + $0xb4] sm:$0xf]
    %v108 = vld [vmem:[#allocation4 + $0xb8] sm:$0xf]
    %v109 = vld [vmem:[#allocation4 + $0xbc] sm:$0xf]
    %v110 = vld [vmem:[#allocation4 + $0xc0] sm:$0xf]
    %v111 = vld [vmem:[#allocation4 + $0xc4] sm:$0xf]
    %v112 = vld [vmem:[#allocation4 + $0xc8] sm:$0xf]
    %v113 = vld [vmem:[#allocation4 + $0xcc] sm:$0xf]
    %v114 = vld [vmem:[#allocation4 + $0xd0] sm:$0xf]
    %v115 = vld [vmem:[#allocation4 + $0xd4] sm:$0xf]
    %v116 = vld [vmem:[#allocation4 + $0xd8] sm:$0xf]
    %v117 = vld [vmem:[#allocation4 + $0xdc] sm:$0xf]
    %v118 = vld [vmem:[#allocation4 + $0xe0] sm:$0xf]
    %v119 = vld [vmem:[#allocation4 + $0xe4] sm:$0xf]
    %v120 = vld [vmem:[#allocation4 + $0xe8] sm:$0xf]
    %v121 = vld [vmem:[#allocation4 + $0xec] sm:$0xf]
    %v122 = vld [vmem:[#allocation4 + $0xf0] sm:$0xf]
    %v123 = vld [vmem:[#allocation4 + $0xf4] sm:$0xf]
    %v124 = vld [vmem:[#allocation4 + $0xf8] sm:$0xf]
    %v125 = vld [vmem:[#allocation4 + $0xfc] sm:$0xf]
    %v126 = vld [vmem:[#allocation4 + $0x100] sm:$0xf]
    %v127 = vld [vmem:[#allocation4 + $0x104] sm:$0xf]
    %v128 = vld [vmem:[#allocation4 + $0x108] sm:$0xf]
    %v129 = vld [vmem:[#allocation4 + $0x10c] sm:$0xf]
    %v130 = vld [vmem:[#allocation4 + $0x110] sm:$0xf]
    %v131 = vld [vmem:[#allocation4 + $0x114] sm:$0xf]
    %v132 = vld [vmem:[#allocation4 + $0x118] sm:$0xf]
    %v133 = vld [vmem:[#allocation4 + $0x11c] sm:$0xf]
    %v134 = vld [vmem:[#allocation4 + $0x120] sm:$0xf]
    %v135 = vld [vmem:[#allocation4 + $0x124] sm:$0xf]
    %v136 = vld [vmem:[#allocation4 + $0x128] sm:$0xf]
    %v137 = vld [vmem:[#allocation4 + $0x12c] sm:$0xf]
    %v138 = vld [vmem:[#allocation4 + $0x130] sm:$0xf]
    %v139 = vld [vmem:[#allocation4 + $0x134] sm:$0xf]
    %v140 = vld [vmem:[#allocation4 + $0x138] sm:$0xf]
    %v141 = vld [vmem:[#allocation4 + $0x13c] sm:$0xf]
    %v142 = vld [vmem:[#allocation4 + $0x140] sm:$0xf]
    %v143 = vld [vmem:[#allocation4 + $0x144] sm:$0xf]
    %v144 = vld [vmem:[#allocation4 + $0x148] sm:$0xf]
    %v145 = vld [vmem:[#allocation4 + $0x14c] sm:$0xf]
    %v146 = vld [vmem:[#allocation4 + $0x150] sm:$0xf]
    %v147 = vld [vmem:[#allocation4 + $0x154] sm:$0xf]
    %v148 = vld [vmem:[#allocation4 + $0x158] sm:$0xf]
    %v149 = vld [vmem:[#allocation4 + $0x15c] sm:$0xf]
    %v150 = vld [vmem:[#allocation4 + $0x160] sm:$0xf]
    %v151 = vld [vmem:[#allocation4 + $0x164] sm:$0xf]
    %v152 = vld [vmem:[#allocation4 + $0x168] sm:$0xf]
    %v153 = vld [vmem:[#allocation4 + $0x16c] sm:$0xf]
    %v154 = vld [vmem:[#allocation4 + $0x170] sm:$0xf]
    %v155 = vld [vmem:[#allocation4 + $0x174] sm:$0xf]
    %v156 = vld [vmem:[#allocation4 + $0x178] sm:$0xf]
    %v157 = vld [vmem:[#allocation4 + $0x17c] sm:$0xf]
    %v158 = vld [vmem:[#allocation4 + $0x180] sm:$0xf]
    %v159 = vld [vmem:[#allocation4 + $0x184] sm:$0xf]
    %v258 = vunpack.c.l.b16 %v62
    %v259 = vunpack.c.l.b16 %v63
    %v260 = vunpack.c.l.b16 %v64
    %v261 = vunpack.c.l.b16 %v65
    %v262 = vunpack.c.l.b16 %v66
    %v263 = vunpack.c.l.b16 %v67
    %v264 = vunpack.c.l.b16 %v68
    %v265 = vunpack.c.l.b16 %v69
    %v266 = vunpack.c.l.b16 %v70
    %v267 = vunpack.c.l.b16 %v71
    %v268 = vunpack.c.l.b16 %v72
    %v269 = vunpack.c.l.b16 %v73
    %v270 = vunpack.c.l.b16 %v74
    %v271 = vunpack.c.l.b16 %v75
    %v272 = vunpack.c.l.b16 %v76
    %v273 = vunpack.c.l.b16 %v77
    %v274 = vunpack.c.l.b16 %v78
    %v275 = vunpack.c.l.b16 %v79
    %v276 = vunpack.c.l.b16 %v80
    %v277 = vunpack.c.l.b16 %v81
    %v278 = vunpack.c.l.b16 %v82
    %v279 = vunpack.c.l.b16 %v83
    %v280 = vunpack.c.l.b16 %v84
    %v281 = vunpack.c.l.b16 %v85
    %v282 = vunpack.c.l.b16 %v86
    %v283 = vunpack.c.l.b16 %v87
    %v284 = vunpack.c.l.b16 %v88
    %v285 = vunpack.c.l.b16 %v89
    %v286 = vunpack.c.l.b16 %v90
    %v287 = vunpack.c.l.b16 %v91
    %v288 = vunpack.c.l.b16 %v92
    %v289 = vunpack.c.l.b16 %v93
    %v290 = vunpack.c.l.b16 %v94
    %v291 = vunpack.c.l.b16 %v95
    %v292 = vunpack.c.l.b16 %v96
    %v293 = vunpack.c.l.b16 %v97
    %v294 = vunpack.c.l.b16 %v98
    %v295 = vunpack.c.l.b16 %v99
    %v296 = vunpack.c.l.b16 %v100
    %v297 = vunpack.c.l.b16 %v101
    %v298 = vunpack.c.l.b16 %v102
    %v299 = vunpack.c.l.b16 %v103
    %v300 = vunpack.c.l.b16 %v104
    %v301 = vunpack.c.l.b16 %v105
    %v302 = vunpack.c.l.b16 %v106
    %v303 = vunpack.c.l.b16 %v107
    %v304 = vunpack.c.l.b16 %v108
    %v305 = vunpack.c.l.b16 %v109
    %v306 = vunpack.c.l.b16 %v110
    %v307 = vunpack.c.l.b16 %v111
    %v308 = vunpack.c.l.b16 %v112
    %v309 = vunpack.c.l.b16 %v113
    %v310 = vunpack.c.l.b16 %v114
    %v311 = vunpack.c.l.b16 %v115
    %v312 = vunpack.c.l.b16 %v116
    %v313 = vunpack.c.l.b16 %v117
    %v314 = vunpack.c.l.b16 %v118
    %v315 = vunpack.c.l.b16 %v119
    %v316 = vunpack.c.l.b16 %v120
    %v317 = vunpack.c.l.b16 %v121
    %v318 = vunpack.c.l.b16 %v122
    %v319 = vunpack.c.l.b16 %v123
    %v320 = vunpack.c.l.b16 %v124
    %v321 = vunpack.c.l.b16 %v125
    %v322 = vunpack.c.l.b16 %v126
    %v323 = vunpack.c.l.b16 %v127
    %v324 = vunpack.c.l.b16 %v128
    %v325 = vunpack.c.l.b16 %v129
    %v326 = vunpack.c.l.b16 %v130
    %v327 = vunpack.c.l.b16 %v131
    %v328 = vunpack.c.l.b16 %v132
    %v329 = vunpack.c.l.b16 %v133
    %v330 = vunpack.c.l.b16 %v134
    %v331 = vunpack.c.l.b16 %v135
    %v332 = vunpack.c.l.b16 %v136
    %v333 = vunpack.c.l.b16 %v137
    %v334 = vunpack.c.l.b16 %v138
    %v335 = vunpack.c.l.b16 %v139
    %v336 = vunpack.c.l.b16 %v140
    %v337 = vunpack.c.l.b16 %v141
    %v338 = vunpack.c.l.b16 %v142
    %v339 = vunpack.c.l.b16 %v143
    %v340 = vunpack.c.l.b16 %v144
    %v341 = vunpack.c.l.b16 %v145
    %v342 = vunpack.c.l.b16 %v146
    %v343 = vunpack.c.l.b16 %v147
    %v344 = vunpack.c.l.b16 %v148
    %v345 = vunpack.c.l.b16 %v149
    %v346 = vunpack.c.l.b16 %v150
    %v347 = vunpack.c.l.b16 %v151
    %v348 = vunpack.c.l.b16 %v152
    %v349 = vunpack.c.l.b16 %v153
    %v350 = vunpack.c.l.b16 %v154
    %v351 = vunpack.c.l.b16 %v155
    %v352 = vunpack.c.l.b16 %v156
    %v353 = vunpack.c.l.b16 %v157
    %v354 = vunpack.c.l.b16 %v158
    %v355 = vunpack.c.l.b16 %v159
    %v356 = vpack.c.b16 %v259, %v258
    %v357 = vpack.c.b16 %v261, %v260
    %v358 = vpack.c.b16 %v263, %v262
    %v359 = vpack.c.b16 %v265, %v264
    %v360 = vpack.c.b16 %v267, %v266
    %v361 = vpack.c.b16 %v269, %v268
    %v362 = vpack.c.b16 %v271, %v270
    %v363 = vpack.c.b16 %v273, %v272
    %v364 = vpack.c.b16 %v275, %v274
    %v365 = vpack.c.b16 %v277, %v276
    %v366 = vpack.c.b16 %v279, %v278
    %v367 = vpack.c.b16 %v281, %v280
    %v368 = vpack.c.b16 %v283, %v282
    %v369 = vpack.c.b16 %v285, %v284
    %v370 = vpack.c.b16 %v287, %v286
    %v371 = vpack.c.b16 %v289, %v288
    %v372 = vpack.c.b16 %v291, %v290
    %v373 = vpack.c.b16 %v293, %v292
    %v374 = vpack.c.b16 %v295, %v294
    %v375 = vpack.c.b16 %v297, %v296
    %v376 = vpack.c.b16 %v299, %v298
    %v377 = vpack.c.b16 %v301, %v300
    %v378 = vpack.c.b16 %v303, %v302
    %v379 = vpack.c.b16 %v305, %v304
    %v380 = vpack.c.b16 %v307, %v306
    %v381 = vpack.c.b16 %v309, %v308
    %v382 = vpack.c.b16 %v311, %v310
    %v383 = vpack.c.b16 %v313, %v312
    %v384 = vpack.c.b16 %v315, %v314
    %v385 = vpack.c.b16 %v317, %v316
    %v386 = vpack.c.b16 %v319, %v318
    %v387 = vpack.c.b16 %v321, %v320
    %v388 = vpack.c.b16 %v323, %v322
    %v389 = vpack.c.b16 %v325, %v324
    %v390 = vpack.c.b16 %v327, %v326
    %v391 = vpack.c.b16 %v329, %v328
    %v392 = vpack.c.b16 %v331, %v330
    %v393 = vpack.c.b16 %v333, %v332
    %v394 = vpack.c.b16 %v335, %v334
    %v395 = vpack.c.b16 %v337, %v336
    %v396 = vpack.c.b16 %v339, %v338
    %v397 = vpack.c.b16 %v341, %v340
    %v398 = vpack.c.b16 %v343, %v342
    %v399 = vpack.c.b16 %v345, %v344
    %v400 = vpack.c.b16 %v347, %v346
    %v401 = vpack.c.b16 %v349, %v348
    %v402 = vpack.c.b16 %v351, %v350
    %v403 = vpack.c.b16 %v353, %v352
    %v404 = vpack.c.b16 %v355, %v354
    %vm454 = vcmask 130048
    %v456 = vsel %vm454, %v61, 0
    %458 = vmatprep.subr.bf16.mxu0 0
    %459 = vmatpush1.bf16.msra.mxu0 %v356
    %460 = vmatprep.subr.bf16.mxu0 0
    %461 = vmatpush1.bf16.msra.mxu0 %v357
    %462 = vmatprep.subr.bf16.mxu0 0
    %463 = vmatpush1.bf16.msra.mxu0 %v358
    %464 = vmatprep.subr.bf16.mxu0 0
    %465 = vmatpush1.bf16.msra.mxu0 %v359
    %466 = vmatprep.subr.bf16.mxu0 0
    %467 = vmatpush1.bf16.msra.mxu0 %v360
    %468 = vmatprep.subr.bf16.mxu0 0
    %469 = vmatpush1.bf16.msra.mxu0 %v361
    %470 = vmatprep.subr.bf16.mxu0 0
    %471 = vmatpush1.bf16.msra.mxu0 %v362
    %472 = vmatprep.subr.bf16.mxu0 0
    %473 = vmatpush1.bf16.msra.mxu0 %v363
    %474 = vmatprep.subr.bf16.mxu0 0
    %475 = vmatpush1.bf16.msra.mxu0 %v364
    %476 = vmatprep.subr.bf16.mxu0 0
    %477 = vmatpush1.bf16.msra.mxu0 %v365
    %478 = vmatprep.subr.bf16.mxu0 0
    %479 = vmatpush1.bf16.msra.mxu0 %v366
    %480 = vmatprep.subr.bf16.mxu0 0
    %481 = vmatpush1.bf16.msra.mxu0 %v367
    %482 = vmatprep.subr.bf16.mxu0 0
    %483 = vmatpush1.bf16.msra.mxu0 %v368
    %484 = vmatprep.subr.bf16.mxu0 0
    %485 = vmatpush1.bf16.msra.mxu0 %v369
    %486 = vmatprep.subr.bf16.mxu0 0
    %487 = vmatpush1.bf16.msra.mxu0 %v370
    %488 = vmatprep.subr.bf16.mxu0 0
    %489 = vmatpush1.bf16.msra.mxu0 %v371
    %490 = vmatprep.mubr.bf16.mxu0 %v56
    %491 = vmatmul.mubr.bf16.gmra.mrb[0].mxu0 %v55
    %v492 = vpop.f32.mrb[0].mxu0
    %v493 = vadd.f32 0.0, %v492
    %v494 = vpop.f32.mrb[0].mxu0
    %v495 = vpop.f32.mrb[0].mxu0
    %v496 = vpop.f32.mrb[0].mxu0
    %497 = vdwg.mxu0
    %498 = vmatprep.subr.bf16.mxu0 0
    %499 = vmatpush1.bf16.msra.mxu0 %v372
    %500 = vmatprep.subr.bf16.mxu0 0
    %501 = vmatpush1.bf16.msra.mxu0 %v373
    %502 = vmatprep.subr.bf16.mxu0 0
    %503 = vmatpush1.bf16.msra.mxu0 %v374
    %504 = vmatprep.subr.bf16.mxu0 0
    %505 = vmatpush1.bf16.msra.mxu0 %v375
    %506 = vmatprep.subr.bf16.mxu0 0
    %507 = vmatpush1.bf16.msra.mxu0 %v376
    %508 = vmatprep.subr.bf16.mxu0 0
    %509 = vmatpush1.bf16.msra.mxu0 %v377
    %510 = vmatprep.subr.bf16.mxu0 0
    %511 = vmatpush1.bf16.msra.mxu0 %v378
    %512 = vmatprep.subr.bf16.mxu0 0
    %513 = vmatpush1.bf16.msra.mxu0 %v379
    %514 = vmatprep.subr.bf16.mxu0 0
    %515 = vmatpush1.bf16.msra.mxu0 %v380
    %516 = vmatprep.subr.bf16.mxu0 0
    %517 = vmatpush1.bf16.msra.mxu0 %v381
    %518 = vmatprep.subr.bf16.mxu0 0
    %519 = vmatpush1.bf16.msra.mxu0 %v382
    %520 = vmatprep.subr.bf16.mxu0 0
    %521 = vmatpush1.bf16.msra.mxu0 %v383
    %522 = vmatprep.subr.bf16.mxu0 0
    %523 = vmatpush1.bf16.msra.mxu0 %v384
    %524 = vmatprep.subr.bf16.mxu0 0
    %525 = vmatpush1.bf16.msra.mxu0 %v385
    %526 = vmatprep.subr.bf16.mxu0 0
    %527 = vmatpush1.bf16.msra.mxu0 %v386
    %528 = vmatprep.subr.bf16.mxu0 0
    %529 = vmatpush1.bf16.msra.mxu0 %v387
    %530 = vmatprep.mubr.bf16.mxu0 %v58
    %531 = vmatmul.mubr.bf16.gmra.mrb[0].mxu0 %v57
    %v532 = vpop.f32.mrb[0].mxu0
    %v533 = vadd.f32 %v493, %v532
    %v534 = vpop.f32.mrb[0].mxu0
    %v535 = vpop.f32.mrb[0].mxu0
    %v536 = vpop.f32.mrb[0].mxu0
    %537 = vdwg.mxu0
    %538 = vmatprep.subr.bf16.mxu0 0
    %539 = vmatpush1.bf16.msra.mxu0 %v388
    %540 = vmatprep.subr.bf16.mxu0 0
    %541 = vmatpush1.bf16.msra.mxu0 %v389
    %542 = vmatprep.subr.bf16.mxu0 0
    %543 = vmatpush1.bf16.msra.mxu0 %v390
    %544 = vmatprep.subr.bf16.mxu0 0
    %545 = vmatpush1.bf16.msra.mxu0 %v391
    %546 = vmatprep.subr.bf16.mxu0 0
    %547 = vmatpush1.bf16.msra.mxu0 %v392
    %548 = vmatprep.subr.bf16.mxu0 0
    %549 = vmatpush1.bf16.msra.mxu0 %v393
    %550 = vmatprep.subr.bf16.mxu0 0
    %551 = vmatpush1.bf16.msra.mxu0 %v394
    %552 = vmatprep.subr.bf16.mxu0 0
    %553 = vmatpush1.bf16.msra.mxu0 %v395
    %554 = vmatprep.subr.bf16.mxu0 0
    %555 = vmatpush1.bf16.msra.mxu0 %v396
    %556 = vmatprep.subr.bf16.mxu0 0
    %557 = vmatpush1.bf16.msra.mxu0 %v397
    %558 = vmatprep.subr.bf16.mxu0 0
    %559 = vmatpush1.bf16.msra.mxu0 %v398
    %560 = vmatprep.subr.bf16.mxu0 0
    %561 = vmatpush1.bf16.msra.mxu0 %v399
    %562 = vmatprep.subr.bf16.mxu0 0
    %563 = vmatpush1.bf16.msra.mxu0 %v400
    %564 = vmatprep.subr.bf16.mxu0 0
    %565 = vmatpush1.bf16.msra.mxu0 %v401
    %566 = vmatprep.subr.bf16.mxu0 0
    %567 = vmatpush1.bf16.msra.mxu0 %v402
    %568 = vmatprep.subr.bf16.mxu0 0
    %569 = vmatpush1.bf16.msra.mxu0 %v403
    %570 = vmatprep.mubr.bf16.mxu0 %v60
    %571 = vmatmul.mubr.bf16.gmra.mrb[0].mxu0 %v59
    %v572 = vpop.f32.mrb[0].mxu0
    %v573 = vadd.f32 %v533, %v572
    %v574 = vpop.f32.mrb[0].mxu0
    %v575 = vpop.f32.mrb[0].mxu0
    %v576 = vpop.f32.mrb[0].mxu0
    %577 = vdwg.mxu0
    %578 = vmatprep.subr.bf16.mxu0 0
    %579 = vmatpush1.bf16.msra.mxu0 %v404
    %580 = vmatprep.subr.bf16.mxu0 0
    %581 = vmatpush1.bf16.msra.mxu0 0
    %582 = vmatprep.subr.bf16.mxu0 0
    %583 = vmatpush1.bf16.msra.mxu0 0
    %584 = vmatprep.subr.bf16.mxu0 0
    %585 = vmatpush1.bf16.msra.mxu0 0
    %586 = vmatprep.subr.bf16.mxu0 0
    %587 = vmatpush1.bf16.msra.mxu0 0
    %588 = vmatprep.subr.bf16.mxu0 0
    %589 = vmatpush1.bf16.msra.mxu0 0
    %590 = vmatprep.subr.bf16.mxu0 0
    %591 = vmatpush1.bf16.msra.mxu0 0
    %592 = vmatprep.subr.bf16.mxu0 0
    %593 = vmatpush1.bf16.msra.mxu0 0
    %594 = vmatprep.subr.bf16.mxu0 0
    %595 = vmatpush1.bf16.msra.mxu0 0
    %596 = vmatprep.subr.bf16.mxu0 0
    %597 = vmatpush1.bf16.msra.mxu0 0
    %598 = vmatprep.subr.bf16.mxu0 0
    %599 = vmatpush1.bf16.msra.mxu0 0
    %600 = vmatprep.subr.bf16.mxu0 0
    %601 = vmatpush1.bf16.msra.mxu0 0
    %602 = vmatprep.subr.bf16.mxu0 0
    %603 = vmatpush1.bf16.msra.mxu0 0
    %604 = vmatprep.subr.bf16.mxu0 0
    %605 = vmatpush1.bf16.msra.mxu0 0
    %606 = vmatprep.subr.bf16.mxu0 0
    %607 = vmatpush1.bf16.msra.mxu0 0
    %608 = vmatprep.subr.bf16.mxu0 0
    %609 = vmatpush1.bf16.msra.mxu0 0
    %610 = vmatprep.mubr.bf16.mxu0 0
    %611 = vmatmul.mubr.bf16.gmra.mrb[0].mxu0 %v456
    %v612 = vpop.f32.mrb[0].mxu0
    %v613 = vadd.f32 %v573, %v612
    %v614 = vpop.f32.mrb[0].mxu0
    %v615 = vpop.f32.mrb[0].mxu0
    %v616 = vpop.f32.mrb[0].mxu0
    %617 = vdwg.mxu0
    %v618 = vsel %vm47, 1, 0
    %vm619 = vcmp.eq.s32.totalorder %v618, 1
    %v620 = vsel %vm619, %v613, 0.0
    %v621 = vpack.c.bf16 %v620, %v620
    %622 = vst [vmem:[%s2] sm:$0xf] %v621
    %s623 = scvt.s32.f32 %s43
    %v624 = vstv %s623
    %v625 = vrcp.pop %v624
    %s626 = vtos %v625
    %v627 = vrot.slane %v620, 4
    %v628 = vadd.f32 %v620, %v627
    %v629 = vrot.slane %v628, 2
    %v630 = vadd.f32 %v628, %v629
    %v631 = vrot.slane %v630, 1
    %v632 = vadd.f32 %v630, %v631
    %v633 = vstv %s626
    %v634 = vmul.f32 %v632, %v633
    %v635 = vsub.f32 %v620, %v634
    %v636 = vsel %vm619, %v635, 0.0
    %v637 = vmul.f32 %v636, %v636
    %v638 = vrot.slane %v637, 4
    %v639 = vadd.f32 %v637, %v638
    %v640 = vrot.slane %v639, 2
    %v641 = vadd.f32 %v639, %v640
    %v642 = vrot.slane %v641, 1
    %v643 = vadd.f32 %v641, %v642
    %vm644 = vcmask 1040384
    %v645 = vsel %vm644, %v634, %v643
    %vm646 = vcmask 1041408
    %v647 = vsel %vm646, %v645, 0.0
    %648 = vst [vmem:[%s3] sm:$0xff] %v647
    // Predicated region
    $region18: #{net_forward.3} parent=1 // pred_check
      _
    $region19: #{net_forward.3} parent=1 // pred_check_branch
      %650 = sbr.rel (0) target = $region21
    $region20: #{net_forward.3} parent=1 // pred_region
      _
    $region21: #{net_forward.3} parent=1 // pred_fallthru
      _
    // Predicated region
    $region22: #{net_forward.3} parent=1 // pred_check
      _
    $region23: #{net_forward.3} parent=1 // pred_check_branch
      %652 = sbr.rel (0) target = $region25
    $region24: #{net_forward.3} parent=1 // pred_region
      _
    $region25: #{net_forward.3} parent=1 // pred_fallthru
      _
    // Predicated region
    $region26: #{net_forward.3} parent=1 // pred_check
      _
    $region27: #{net_forward.3} parent=1 // pred_check_branch
      %654 = sbr.rel (0) target = $region29
    $region28: #{net_forward.3} parent=1 // pred_region
      _
    $region29: #{net_forward.3} parent=1 // pred_fallthru
      _
    // Predicated region
    $region30: #{net_forward.3} parent=1 // pred_check
      _
    $region31: #{net_forward.3} parent=1 // pred_check_branch
      %656 = sbr.rel (0) target = $region33
    $region32: #{net_forward.3} parent=1 // pred_region
      _
    $region33: #{net_forward.3} parent=1 // pred_fallthru
      _
    %657 = vsyncpa [#allocation3], 1
    %658 = vsyncpa [#allocation5], 1

// kernel: net_forward.5
$region0: #{net_forward.5}
  #allocation0 [shape = 'u32[]', space=smem, size = 0x4, offset = 0x4, fixed_abs, tag = 'smem constant byte address 0x4 - core index']
  #allocation1 [shape = 'u32[144,128]{1,0:T(1,128)}', space=vmem, size = 0x12000, scoped, tag = 'internal scratch']
  %s0 = inlined_call_operand.vmem [shape: bf16[8,128], index: 0, kind: input, shape index: {}]
  %s1 = inlined_call_operand.vmem [shape: f32[2,128], index: 1, kind: input, shape index: {}]
  %s2 = inlined_call_operand.vmem [shape: bf16[128,128], index: 2, kind: input, shape index: {}]
  %s3 = inlined_call_operand.vmem [shape: f32[1,128], index: 3, kind: input, shape index: {}]
  %s4 = inlined_call_operand.hbm [shape: f32[8,128], index: 4, kind: output, shape index: {}]
  %s5 = sld [smem:[#allocation0]]
  $region26: #{net_forward.5} parent=0
    _
  %s7 = ssub.s32 1, %s5
  %s8 = scalar_select 0, %s7, %s5
  $region1: #{net_forward.5} parent=0
    #allocation2 [shape = 'u8[4096]{0}', space=vmem, size = 0x1000, scoped, tag = 'output window, operand 0, single buffered']
    #allocation3 [shape = 's32[1]{0}', space=sflag, size = 0x4, scoped, tag = 'scoped memory for net_forward.5']
    %9 = vsyncpa [#allocation3], 0
    // Predicated region
    $region2: #{net_forward.5} parent=1 // pred_check
      _
    $region3: #{net_forward.5} parent=1 // pred_check_branch
      %11 = sbr.rel (0) target = $region5
    $region4: #{net_forward.5} parent=1 // pred_region
      _
    $region5: #{net_forward.5} parent=1 // pred_fallthru
      _
    // Predicated region
    $region6: #{net_forward.5} parent=1 // pred_check
      _
    $region7: #{net_forward.5} parent=1 // pred_check_branch
      %13 = sbr.rel (0) target = $region9
    $region8: #{net_forward.5} parent=1 // pred_region
      _
    $region9: #{net_forward.5} parent=1 // pred_fallthru
      _
    // Predicated region
    $region10: #{net_forward.5} parent=1 // pred_check
      _
    $region11: #{net_forward.5} parent=1 // pred_check_branch
      %15 = sbr.rel (0) target = $region13
    $region12: #{net_forward.5} parent=1 // pred_region
      _
    $region13: #{net_forward.5} parent=1 // pred_fallthru
      _
    // Predicated region
    $region14: #{net_forward.5} parent=1 // pred_check
      _
    $region15: #{net_forward.5} parent=1 // pred_check_branch
      %17 = sbr.rel (0) target = $region17
    $region16: #{net_forward.5} parent=1 // pred_region
      _
    $region17: #{net_forward.5} parent=1 // pred_fallthru
      _
    %v19 = vld [vmem:[%s1] sm:$0x3]
    %v20 = vld [vmem:[%s0] sm:$0xf]
    %v21 = vunpack.c.l.bf16 %v20
    %v22 = vlaneseq
    %v23 = vshrl.u32 %v22, 7
    %v24 = vsub.s32 0, %v23
    %v25 = vrot.slane %v19, %v24
    %v26 = vmul.f32 %v21, %v25
    %v27 = vlaneseq
    %v28 = vshrl.u32 %v27, 7
    %v29 = vsub.s32 1, %v28
    %v30 = vrot.slane %v19, %v29
    %v31 = vadd.f32 %v26, %v30
    %v32 = vmax.f32 %v31, 0.0
    %v33 = vpack.c.bf16 %v32, %v32
    %v34 = vld [vmem:[%s2] sm:$0xf]
    %v35 = vld [vmem:[%s2 + $0x4] sm:$0xf]
    %v36 = vld [vmem:[%s2 + $0x8] sm:$0xf]
    %v37 = vld [vmem:[%s2 + $0xc] sm:$0xf]
    %v38 = vld [vmem:[%s2 + $0x10] sm:$0xf]
    %v39 = vld [vmem:[%s2 + $0x14] sm:$0xf]
    %v40 = vld [vmem:[%s2 + $0x18] sm:$0xf]
    %v41 = vld [vmem:[%s2 + $0x1c] sm:$0xf]
    %v42 = vld [vmem:[%s2 + $0x20] sm:$0xf]
    %v43 = vld [vmem:[%s2 + $0x24] sm:$0xf]
    %v44 = vld [vmem:[%s2 + $0x28] sm:$0xf]
    %v45 = vld [vmem:[%s2 + $0x2c] sm:$0xf]
    %v46 = vld [vmem:[%s2 + $0x30] sm:$0xf]
    %v47 = vld [vmem:[%s2 + $0x34] sm:$0xf]
    %v48 = vld [vmem:[%s2 + $0x38] sm:$0xf]
    %v49 = vld [vmem:[%s2 + $0x3c] sm:$0xf]
    %v50 = vld [vmem:[%s3] sm:$0x1]
    %v52 = vlaneseq
    %v53 = vshrl.u32 %v52, 7
    %v54 = vsub.s32 0, %v53
    %v55 = vrot.slane %v50, %v54
    %v73 = vunpack.c.l.b16 %v34
    %v74 = vunpack.c.l.b16 %v35
    %v75 = vunpack.c.l.b16 %v36
    %v76 = vunpack.c.l.b16 %v37
    %v77 = vunpack.c.l.b16 %v38
    %v78 = vunpack.c.l.b16 %v39
    %v79 = vunpack.c.l.b16 %v40
    %v80 = vunpack.c.l.b16 %v41
    %v81 = vunpack.c.l.b16 %v42
    %v82 = vunpack.c.l.b16 %v43
    %v83 = vunpack.c.l.b16 %v44
    %v84 = vunpack.c.l.b16 %v45
    %v85 = vunpack.c.l.b16 %v46
    %v86 = vunpack.c.l.b16 %v47
    %v87 = vunpack.c.l.b16 %v48
    %v88 = vunpack.c.l.b16 %v49
    %v89 = vpack.c.b16 %v74, %v73
    %v90 = vpack.c.b16 %v76, %v75
    %v91 = vpack.c.b16 %v78, %v77
    %v92 = vpack.c.b16 %v80, %v79
    %v93 = vpack.c.b16 %v82, %v81
    %v94 = vpack.c.b16 %v84, %v83
    %v95 = vpack.c.b16 %v86, %v85
    %v96 = vpack.c.b16 %v88, %v87
    %105 = vmatprep.subr.bf16.mxu0 0
    %106 = vmatpush1.bf16.msra.mxu0 %v89
    %107 = vmatprep.subr.bf16.mxu0 0
    %108 = vmatpush1.bf16.msra.mxu0 %v90
    %109 = vmatprep.subr.bf16.mxu0 0
    %110 = vmatpush1.bf16.msra.mxu0 %v91
    %111 = vmatprep.subr.bf16.mxu0 0
    %112 = vmatpush1.bf16.msra.mxu0 %v92
    %113 = vmatprep.subr.bf16.mxu0 0
    %114 = vmatpush1.bf16.msra.mxu0 %v93
    %115 = vmatprep.subr.bf16.mxu0 0
    %116 = vmatpush1.bf16.msra.mxu0 %v94
    %117 = vmatprep.subr.bf16.mxu0 0
    %118 = vmatpush1.bf16.msra.mxu0 %v95
    %119 = vmatprep.subr.bf16.mxu0 0
    %120 = vmatpush1.bf16.msra.mxu0 %v96
    %121 = vmatprep.subr.bf16.mxu0 0
    %122 = vmatpush1.bf16.msra.mxu0 0
    %123 = vmatprep.subr.bf16.mxu0 0
    %124 = vmatpush1.bf16.msra.mxu0 0
    %125 = vmatprep.subr.bf16.mxu0 0
    %126 = vmatpush1.bf16.msra.mxu0 0
    %127 = vmatprep.subr.bf16.mxu0 0
    %128 = vmatpush1.bf16.msra.mxu0 0
    %129 = vmatprep.subr.bf16.mxu0 0
    %130 = vmatpush1.bf16.msra.mxu0 0
    %131 = vmatprep.subr.bf16.mxu0 0
    %132 = vmatpush1.bf16.msra.mxu0 0
    %133 = vmatprep.subr.bf16.mxu0 0
    %134 = vmatpush1.bf16.msra.mxu0 0
    %135 = vmatprep.subr.bf16.mxu0 0
    %136 = vmatpush1.bf16.msra.mxu0 0
    %137 = vmatprep.mubr.bf16.mxu0 0
    %138 = vmatmul.mubr.bf16.gmra.mrb[0].mxu0 %v33
    %v139 = vpop.f32.mrb[0].mxu0
    %v140 = vadd.f32 %v55, %v139
    %v141 = vpop.f32.mrb[0].mxu0
    %v142 = vpop.f32.mrb[0].mxu0
    %v143 = vpop.f32.mrb[0].mxu0
    %144 = vdwg.mxu0
    %145 = vst [vmem:[#allocation2] sm:$0xff] %v140
    // Predicated region
    $region18: #{net_forward.5} parent=1 // pred_check
      _
    $region19: #{net_forward.5} parent=1 // pred_check_branch
      %147 = sbr.rel (0) target = $region21
    $region20: #{net_forward.5} parent=1 // pred_region
      %s149 = ssub.s32 128, 128
      %150 = vsyncadd [#allocation3], %s149
      %s152 = sshll.u32 [#allocation2], 4
      %s153 = int_to_ptr.vmem [resolvable:$true] %s152
      %155 = dma.vmem_to_hbm [thread:$0]  %s153, 128, %s4, [#allocation3]
    $region21: #{net_forward.5} parent=1 // pred_fallthru
      _
    // Predicated region
    $region22: #{net_forward.5} parent=1 // pred_check
      _
    $region23: #{net_forward.5} parent=1 // pred_check_branch
      %157 = sbr.rel (0) target = $region25
    $region24: #{net_forward.5} parent=1 // pred_region
      %158 = dma.done [#allocation3], 128
    $region25: #{net_forward.5} parent=1 // pred_fallthru
      _
    %159 = vsyncpa [#allocation3], 1

</llo_original>
